<compile_context>
chip_gen: v6e
topology: v6e:2x2x1
jax: 0.10.0
libtpu: 0.0.40
codegen_flags: <defaults>
</compile_context>

<pallas_src>
import functools

import jax
import jax.numpy as jnp
from jax.experimental import pallas as pl
from jax.experimental.pallas import tpu as pltpu


def _acc_sum_kernel(x_ref, t_ref, o_ref, *, n_rows, tile_n, steps_per_part):
    """Accumulate sum_i input_[i, target[i]] over this partition's row tiles."""
    p = pl.program_id(0)   # partition ("parallel" axis)
    s = pl.program_id(1)   # reduction step within the partition ("arbitrary")

    @pl.when(s == 0)
    def _():
        o_ref[...] = jnp.zeros_like(o_ref)

    x = x_ref[...]                      # (tile_n, C) in native dtype (no full-tile f32 cast)
    t = t_ref[...]                      # (tile_n, 1) int32 target class
    col = jax.lax.broadcasted_iota(jnp.int32, x.shape, 1)

    # where-gather: at most one non-zero per row, so the row reduction is exact
    # in the native dtype and non-target NaN/Inf columns cannot poison it.
    # TODO(synk): PyTorch advanced indexing raises on out-of-range targets;
    #             here such rows silently contribute 0.
    per_row = jnp.sum(jnp.where(col == t, x, jnp.zeros((), x.dtype)),
                      axis=-1, keepdims=True)               # (tile_n, 1)

    # Mask rows past the true N: the last (partial) block and any
    # over-partitioned steps contain garbage in both x and t.
    row = jax.lax.broadcasted_iota(jnp.int32, per_row.shape, 0)
    global_row = (p * steps_per_part + s) * tile_n + row
    valid = global_row < n_rows

    partial = jnp.sum(jnp.where(valid, per_row.astype(jnp.float32), 0.0))
    o_ref[...] += partial               # broadcast scalar into resident (8, 128) block


def _round_up(x, m):
    return -(-x // m) * m


def _pick_tile_n(n, c, itemsize, block_bytes):
    lanes = _round_up(c, 128)                    # class axis pads to 128 lanes in VMEM
    bytes_per_row = lanes * itemsize + 128 * 4   # + the (tile_n, 1) int32 target block
    t = block_bytes // max(1, bytes_per_row)
    t = max(8, (t // 8) * 8)                     # multiple of 8 sublanes, no upper row cap
    return min(t, _round_up(n, 8))


def accuracy_loss(input_, target, *, tile_n=None, num_partitions=1,
                  block_bytes=4 * 1024 * 1024):
    """1 - mean_i input_[i, target[i]].  input_: (N, C) float, target: (N,) int."""
    N, C = input_.shape
    itemsize = jnp.dtype(input_.dtype).itemsize
    lanes = _round_up(C, 128)

    if tile_n is None:
        tile_n = _pick_tile_n(N, C, itemsize, block_bytes)
    else:
        tile_n = max(8, (tile_n // 8) * 8)
    tile_n = min(tile_n, _round_up(N, 8))

    nblk = -(-N // tile_n)                                  # row tiles over the UNPADDED N
    P = max(1, min(int(num_partitions), nblk))              # "parallel" partitions (use 2 on v7x)
    S = -(-nblk // P)                                       # reduction steps per partition
    last_blk = nblk - 1

    t = target.astype(jnp.int32).reshape(N, 1)

    # VMEM budget: double-buffered x + t blocks + resident output (+ slack).
    x_blk_bytes = tile_n * lanes * itemsize
    t_blk_bytes = tile_n * 128 * 4
    vmem_needed = 2 * (x_blk_bytes + t_blk_bytes) + 2 * 8 * 128 * 4 + (2 << 20)
    # NOTE: if an xprof/bundle dump shows the P axis staying on one v7x core,
    # switch its semantics to pltpu.CORE_PARALLEL.
    comp_kwargs = dict(dimension_semantics=("parallel", "arbitrary"))
    if vmem_needed > 14 * 1024 * 1024:
        # TODO(synk): for vocab-sized C add a second "arbitrary" grid axis tiling C
        #             (offset the col iota by c*tile_c) instead of one huge block.
        comp_kwargs["vmem_limit_bytes"] = int(min(vmem_needed, 64 * 1024 * 1024))

    kernel = functools.partial(_acc_sum_kernel, n_rows=N, tile_n=tile_n,
                               steps_per_part=S)

    out = pl.pallas_call(
        kernel,
        out_shape=jax.ShapeDtypeStruct((8 * P, 128), jnp.float32),
        grid=(P, S),
        in_specs=[
            # Clamp the block index so over-partitioned (p, s) steps stay in
            # bounds; their rows are masked to 0 inside the kernel anyway.
            pl.BlockSpec((tile_n, C), lambda p, s: (jnp.minimum(p * S + s, last_blk), 0)),
            pl.BlockSpec((tile_n, 1), lambda p, s: (jnp.minimum(p * S + s, last_blk), 0)),
        ],
        # One lane-dense (8, 128) f32 accumulator block per partition, resident
        # across the inner reduction axis.
        out_specs=pl.BlockSpec((8, 128), lambda p, s: (p, 0)),
        compiler_params=pltpu.CompilerParams(**comp_kwargs),
        cost_estimate=pl.CostEstimate(
            flops=2 * N * C,
            transcendentals=0,
            bytes_accessed=N * C * itemsize + N * 4 + P * 8 * 128 * 4,
        ),
    )(input_, t)

    # TODO(synk): for C < 128 a lane-dense repack of (N, C) would recover the
    #             128/C wasted lanes; skipped here to avoid reintroducing a
    #             full-tensor pad/copy in the wrapper.
    partial_sums = out[::8, 0]                              # (P,) one running sum each
    return (1.0 - jnp.sum(partial_sums) / jnp.float32(N)).astype(jnp.float32)


def _reference(input_, target):
    """Pure-JAX mirror of the PyTorch forward: 1 - input_[range(N), target].mean()."""
    N = input_.shape[0]
    p = input_[jnp.arange(N), target]
    return (1.0 - jnp.mean(p.astype(jnp.float32))).astype(jnp.float32)


if __name__ == "__main__":
    key = jax.random.PRNGKey(0)
    k1, k2 = jax.random.split(key)

    # N deliberately NOT a multiple of tile_n so the in-kernel row mask
    # (replacing the removed jnp.pad) is exercised.
    N, C = 60, 8
    logits = jax.random.normal(k1, (N, C), jnp.float32)
    input_ = jax.nn.softmax(logits, axis=-1)                 # (N, C) "probabilities"
    target = jax.random.randint(k2, (N,), 0, C, jnp.int32)   # (N,)

    # tile_n=16, 2 partitions -> grid (2, 2) with a partial last block:
    # exercises the parallel split, multi-step accumulation, and row masking.
    loss = accuracy_loss(input_, target, tile_n=16, num_partitions=2)
    loss = jax.block_until_ready(loss)

    ref = jax.block_until_ready(_reference(input_, target))
    assert jnp.allclose(loss, ref, atol=1e-5, rtol=1e-5), (loss, ref)

    print("KERNEL_OK")
</pallas_src>

<mosaic_0001>
module attributes {stable_mosaic.version = 11 : i64} {
  func.func @_acc_sum_kernel(%arg0: i32, %arg1: i32, %arg2: memref<16x8xf32, #tpu.memory_space<vmem>>, %arg3: memref<16x1xi32, #tpu.memory_space<vmem>>, %arg4: memref<8x128xf32, #tpu.memory_space<vmem>>) attributes {dimension_semantics = [#tpu.dimension_semantics<parallel>, #tpu.dimension_semantics<arbitrary>], iteration_bounds = array<i64: 2, 2>, scalar_prefetch = 0 : i64, scratch_operands = 0 : i64, tpu.core_type = #tpu.core_type<tc>, window_params = [{transform_indices = @transform_0, window_bounds = array<i64: 16, 8>}, {transform_indices = @transform_1, window_bounds = array<i64: 16, 1>}, {transform_indices = @transform_2, window_bounds = array<i64: 8, 128>}]} {
    %c0_i32 = arith.constant 0 : i32
    %0 = arith.cmpi eq, %arg1, %c0_i32 : i32
    %1 = arith.extui %0 : i1 to i32
    %c0_i32_0 = arith.constant 0 : i32
    %2 = arith.cmpi ne, %1, %c0_i32_0 : i32
    scf.if %2 {
      %cst_11 = arith.constant 0.000000e+00 : f32
      %30 = vector.broadcast %cst_11 : f32 to vector<8x128xf32>
      %c0_12 = arith.constant 0 : index
      %c0_13 = arith.constant 0 : index
      %31 = vector.load %arg4[%c0_12, %c0_13] : memref<8x128xf32, #tpu.memory_space<vmem>>, vector<8x128xf32>
      tpu.vector_store %arg4[%c0_12, %c0_13], %30 {strides = array<i32>} : memref<8x128xf32, #tpu.memory_space<vmem>>, vector<8x128xf32>,
    } else {
    }
    %c0 = arith.constant 0 : index
    %c0_1 = arith.constant 0 : index
    %3 = vector.load %arg2[%c0, %c0_1] : memref<16x8xf32, #tpu.memory_space<vmem>>, vector<16x8xf32>
    %c0_2 = arith.constant 0 : index
    %c0_3 = arith.constant 0 : index
    %4 = vector.load %arg3[%c0_2, %c0_3] : memref<16x1xi32, #tpu.memory_space<vmem>>, vector<16x1xi32>
    %5 = tpu.iota {dimensions = array<i32: 1>} : vector<16x8xi32>
    %6 = vector.broadcast %4 : vector<16x1xi32> to vector<16x8xi32>
    %7 = arith.cmpi eq, %5, %6 : vector<16x8xi32>
    %cst = arith.constant 0.000000e+00 : f32
    %8 = vector.broadcast %cst : f32 to vector<16x8xf32>
    %9 = arith.select %7, %3, %8 : vector<16x8xi1>, vector<16x8xf32>
    %cst_4 = arith.constant dense<0.000000e+00> : vector<16xf32>
    %10 = vector.multi_reduction <add>, %9, %cst_4 [1] : vector<16x8xf32> to vector<16xf32>
    %11 = vector.shape_cast %10 : vector<16xf32> to vector<16x1xf32>
    %12 = tpu.iota {dimensions = array<i32: 0>} : vector<16x1xi32>
    %c2_i32 = arith.constant 2 : i32
    %13 = arith.muli %arg0, %c2_i32 : i32
    %14 = arith.addi %13, %arg1 : i32
    %c16_i32 = arith.constant 16 : i32
    %15 = arith.muli %14, %c16_i32 : i32
    %16 = vector.broadcast %15 : i32 to vector<16x1xi32>
    %17 = arith.addi %16, %12 : vector<16x1xi32>
    %c60_i32 = arith.constant 60 : i32
    %18 = vector.broadcast %c60_i32 : i32 to vector<16x1xi32>
    %19 = arith.cmpi slt, %17, %18 : vector<16x1xi32>
    %cst_5 = arith.constant 0.000000e+00 : f32
    %20 = vector.broadcast %cst_5 : f32 to vector<16x1xf32>
    %21 = arith.select %19, %11, %20 : vector<16x1xi1>, vector<16x1xf32>
    %22 = vector.shape_cast %21 : vector<16x1xf32> to vector<1x16x1xf32>
    %cst_6 = arith.constant dense<0.000000e+00> : vector<1xf32>
    %23 = vector.multi_reduction <add>, %22, %cst_6 [1, 2] : vector<1x16x1xf32> to vector<1xf32>
    %24 = vector.shape_cast %23 : vector<1xf32> to vector<1x1x1xf32>
    %25 = vector.extract %24[0, 0, 0] : f32 from vector<1x1x1xf32>
    %c0_7 = arith.constant 0 : index
    %c0_8 = arith.constant 0 : index
    %26 = vector.load %arg4[%c0_7, %c0_8] : memref<8x128xf32, #tpu.memory_space<vmem>>, vector<8x128xf32>
    %27 = vector.broadcast %25 : f32 to vector<8x128xf32>
    %28 = arith.addf %26, %27 : vector<8x128xf32>
    %c0_9 = arith.constant 0 : index
    %c0_10 = arith.constant 0 : index
    %29 = vector.load %arg4[%c0_9, %c0_10] : memref<8x128xf32, #tpu.memory_space<vmem>>, vector<8x128xf32>
    tpu.vector_store %arg4[%c0_9, %c0_10], %28 {strides = array<i32>} : memref<8x128xf32, #tpu.memory_space<vmem>>, vector<8x128xf32>,
    return
  }
  func.func @transform_0(%arg0: i32, %arg1: i32) -> (i32, i32) {
    %c2_i32 = arith.constant 2 : i32
    %0 = arith.muli %arg0, %c2_i32 : i32
    %1 = arith.addi %0, %arg1 : i32
    %c3_i32 = arith.constant 3 : i32
    %2 = arith.minsi %1, %c3_i32 : i32
    %c0_i32 = arith.constant 0 : i32
    %c0_i32_0 = arith.constant 0 : i32
    return %2, %c0_i32 : i32, i32
  }
  func.func @transform_1(%arg0: i32, %arg1: i32) -> (i32, i32) {
    %c2_i32 = arith.constant 2 : i32
    %0 = arith.muli %arg0, %c2_i32 : i32
    %1 = arith.addi %0, %arg1 : i32
    %c3_i32 = arith.constant 3 : i32
    %2 = arith.minsi %1, %c3_i32 : i32
    %c0_i32 = arith.constant 0 : i32
    %c0_i32_0 = arith.constant 0 : i32
    return %2, %c0_i32 : i32, i32
  }
  func.func @transform_2(%arg0: i32, %arg1: i32) -> (i32, i32) {
    %c0_i32 = arith.constant 0 : i32
    %c0_i32_0 = arith.constant 0 : i32
    return %arg0, %c0_i32 : i32, i32
  }
}

</mosaic_0001>

<llo_original>
// kernel: tpu_custom_call.1
$region0: #{tpu_custom_call.1}
  #allocation0 [shape = 'u32[]', space=smem, size = 0x4, offset = 0x4, fixed_abs, tag = 'smem constant byte address 0x4 - core index']
  #allocation1 [shape = 'u32[144,128]{1,0:T(1,128)}', space=vmem, size = 0x12000, scoped, tag = 'internal scratch']
  %s0 = inlined_call_operand.vmem [shape: f32[60,8], index: 0, kind: input, shape index: {}]
  %s1 = inlined_call_operand.vmem [shape: s32[60,1], index: 1, kind: input, shape index: {}]
  %s2 = inlined_call_operand.hbm [shape: f32[16,128], index: 2, kind: output, shape index: {}]
  %s3 = sld [smem:[#allocation0]]
  $region45: #{tpu_custom_call.1} parent=0
    _
  %s5 = ssub.s32 1, %s3
  %s6 = scalar_select 0, %s5, %s3
  $region1: #{tpu_custom_call.1} parent=0
    #allocation2 [shape = 'u8[8192]{0}', space=vmem, size = 0x2000, scoped, tag = 'output window, operand 0']
    #allocation3 [shape = 's32[2]{0}', space=sflag, size = 0x8, scoped, tag = 'scoped memory for tpu_custom_call.1']
    %7 = vsyncpa [#allocation3], 0
    %s8 = scalar_lea.sflag [#allocation3], 1
    %9 = vsyncpa %s8, 0
    loop: start=0, step=1, limit=6
    $region2: #{tpu_custom_call.1} parent=1 // loop_pre_header
      _
    $region3: #{tpu_custom_call.1} parent=1 // loop_header
      %s11 = sphi 0, %s15
      %p12 = scmp.ge.s32.totalorder %s11, 6
      %s18 = sphi 0, %s30
      %s19 = sphi 0, %s26
      %s20 = sphi 0, %s18
      %s21 = sphi 0, %s19
      %s22 = sphi 0, %s20
      %s23 = sphi 0, %s21
      %s41 = sphi 0, %s43
      %s44 = sphi 0, %s41
      %s45 = sphi 0, %s44
      %s61 = sphi 0, %s45
      %s75 = sphi 0, %s77
      %s78 = sphi 0, %s75
      %s79 = sphi 0, %s78
      %s95 = sphi 0, %s79
      %s101 = sphi 0, %s103
      %s104 = sphi 0, %s101
      %s105 = sphi 0, %s104
      %s121 = sphi 0, %s105
    $region4: #{tpu_custom_call.1} parent=1 // loop_header_branch
      %14 = sbr.rel (%p12) target = $region8
    $region5: #{tpu_custom_call.1} parent=1 // loop_body
      %s16 = ssub.s32 %s11, 1
      %s17 = ssub.s32 %s11, 2
      %s24 = sadd.s32 1, %s19
      %p25 = scmp.ge.s32.totalorder %s24, 2
      %s26 = scalar_select %p25, 0, %s24
      %s27 = sadd.s32 1, %s18
      %s28 = scalar_select %p25, %s27, %s18
      %p29 = scmp.ge.s32.totalorder %s28, 2
      %s30 = scalar_select %p29, 0, %s28
      %s31 = smul.u32 %s18, 2
      %s32 = sadd.s32 %s31, %s19
      %p33 = scmp.lt.s32.totalorder %s32, 3
      %s34 = scalar_select %p33, %s32, 3
      %s35 = smul.u32 %s30, 2
      %s36 = sadd.s32 %s35, %s26
      %p37 = scmp.lt.s32.totalorder %s36, 3
      %s38 = scalar_select %p37, %s36, 3
      %s39 = ssub.s32 %s34, %s38
      %p40 = scmp.eq.s32.totalorder %s39, 0
      %s42 = sadd.s32 %s41, 1
      %s43 = scalar_select %p40, %s41, %s42
      %p46 = pneg %p40
      %p47 = scmp.eq.s32.totalorder %s11, 3
      %p48 = por %p46, %p47
      %p49 = scmp.ne.s32.totalorder %s41, %s44
      %p50 = scmp.eq.s32.totalorder %s11, 0
      %p51 = por %p49, %p50
      %p52 = scmp.ne.s32.totalorder %s41, %s44
      %p53 = scmp.eq.s32.totalorder %s16, 3
      %p54 = por %p52, %p53
      %p55 = scmp.ne.s32.totalorder %s44, %s45
      %p56 = scmp.eq.s32.totalorder %s16, 0
      %p57 = por %p55, %p56
      %p58 = scmp.ne.s32.totalorder %s44, %s45
      %p59 = scmp.eq.s32.totalorder %s17, 3
      %p60 = por %p58, %p59
      %p62 = scmp.ne.s32.totalorder %s45, %s61
      %p63 = scmp.eq.s32.totalorder %s17, 0
      %p64 = por %p62, %p63
      %s65 = smul.u32 %s18, 2
      %s66 = sadd.s32 %s65, %s19
      %p67 = scmp.lt.s32.totalorder %s66, 3
      %s68 = scalar_select %p67, %s66, 3
      %s69 = smul.u32 %s30, 2
      %s70 = sadd.s32 %s69, %s26
      %p71 = scmp.lt.s32.totalorder %s70, 3
      %s72 = scalar_select %p71, %s70, 3
      %s73 = ssub.s32 %s68, %s72
      %p74 = scmp.eq.s32.totalorder %s73, 0
      %s76 = sadd.s32 %s75, 1
      %s77 = scalar_select %p74, %s75, %s76
      %p80 = pneg %p74
      %p81 = scmp.eq.s32.totalorder %s11, 3
      %p82 = por %p80, %p81
      %p83 = scmp.ne.s32.totalorder %s75, %s78
      %p84 = scmp.eq.s32.totalorder %s11, 0
      %p85 = por %p83, %p84
      %p86 = scmp.ne.s32.totalorder %s75, %s78
      %p87 = scmp.eq.s32.totalorder %s16, 3
      %p88 = por %p86, %p87
      %p89 = scmp.ne.s32.totalorder %s78, %s79
      %p90 = scmp.eq.s32.totalorder %s16, 0
      %p91 = por %p89, %p90
      %p92 = scmp.ne.s32.totalorder %s78, %s79
      %p93 = scmp.eq.s32.totalorder %s17, 3
      %p94 = por %p92, %p93
      %p96 = scmp.ne.s32.totalorder %s79, %s95
      %p97 = scmp.eq.s32.totalorder %s17, 0
      %p98 = por %p96, %p97
      %s99 = ssub.s32 %s18, %s30
      %p100 = scmp.eq.s32.totalorder %s99, 0
      %s102 = sadd.s32 %s101, 1
      %s103 = scalar_select %p100, %s101, %s102
      %p106 = pneg %p100
      %p107 = scmp.eq.s32.totalorder %s11, 3
      %p108 = por %p106, %p107
      %p109 = scmp.ne.s32.totalorder %s101, %s104
      %p110 = scmp.eq.s32.totalorder %s11, 0
      %p111 = por %p109, %p110
      %p112 = scmp.ne.s32.totalorder %s101, %s104
      %p113 = scmp.eq.s32.totalorder %s16, 3
      %p114 = por %p112, %p113
      %p115 = scmp.ne.s32.totalorder %s104, %s105
      %p116 = scmp.eq.s32.totalorder %s16, 0
      %p117 = por %p115, %p116
      %p118 = scmp.ne.s32.totalorder %s104, %s105
      %p119 = scmp.eq.s32.totalorder %s17, 3
      %p120 = por %p118, %p119
      %p122 = scmp.ne.s32.totalorder %s105, %s121
      %p123 = scmp.eq.s32.totalorder %s17, 0
      %p124 = por %p122, %p123
      %p125 = scmp.le.s32.totalorder 1, %s11
      %p126 = scmp.lt.s32.totalorder %s11, 5
      %p127 = pnand %p125, %p126
      %p128 = pneg %p127
      // Predicated region
      $region9: #{tpu_custom_call.1} parent=5 // pred_check
        _
      $region10: #{tpu_custom_call.1} parent=5 // pred_check_branch
        %130 = sbr.rel (%p127) target = $region12
      $region11: #{tpu_custom_call.1} parent=5 // pred_region
        %s131 = ssub.s32 %s11, 1
      $region12: #{tpu_custom_call.1} parent=5 // pred_fallthru
        _
      %p132 = scmp.lt.s32.totalorder %s11, 4
      // Predicated region
      $region13: #{tpu_custom_call.1} parent=5 // pred_check
        %p133 = pneg %p132
      $region14: #{tpu_custom_call.1} parent=5 // pred_check_branch
        %135 = sbr.rel (%p133) target = $region16
      $region15: #{tpu_custom_call.1} parent=5 // pred_region
        // Predicated region
        $region17: #{tpu_custom_call.1} parent=15 // pred_check
          %p136 = pneg %p51
        $region18: #{tpu_custom_call.1} parent=15 // pred_check_branch
          %138 = sbr.rel (%p136) target = $region20
        $region19: #{tpu_custom_call.1} parent=15 // pred_region
          %s139 = smul.u32 %s18, 2
          %s140 = sadd.s32 %s139, %s19
          %p141 = scmp.lt.s32.totalorder %s140, 3
          %s142 = scalar_select %p141, %s140, 3
          %s143 = smul.u32 2, %s142
          %p144 = scmp.lt.s32.totalorder %s143, 7
          %s145 = scalar_select %p144, %s143, 7
          %s146 = smul.addr %s145, 8
          %s147 = scalar_lea.vmem %s0, %s146
          %s148 = smul.u32 %s18, 2
          %s149 = sadd.s32 %s148, %s19
          %p150 = scmp.lt.s32.totalorder %s149, 3
          %s151 = scalar_select %p150, %s149, 3
          %s152 = smul.u32 2, %s151
        $region20: #{tpu_custom_call.1} parent=15 // pred_fallthru
          _
        // Predicated region
        $region21: #{tpu_custom_call.1} parent=15 // pred_check
          %p153 = pneg %p85
        $region22: #{tpu_custom_call.1} parent=15 // pred_check_branch
          %155 = sbr.rel (%p153) target = $region24
        $region23: #{tpu_custom_call.1} parent=15 // pred_region
          %s156 = smul.u32 %s18, 2
          %s157 = sadd.s32 %s156, %s19
          %p158 = scmp.lt.s32.totalorder %s157, 3
          %s159 = scalar_select %p158, %s157, 3
          %s160 = smul.u32 2, %s159
          %p161 = scmp.lt.s32.totalorder %s160, 7
          %s162 = scalar_select %p161, %s160, 7
          %s163 = smul.addr %s162, 8
          %s164 = scalar_lea.vmem %s1, %s163
          %s165 = smul.u32 %s18, 2
          %s166 = sadd.s32 %s165, %s19
          %p167 = scmp.lt.s32.totalorder %s166, 3
          %s168 = scalar_select %p167, %s166, 3
          %s169 = smul.u32 2, %s168
        $region24: #{tpu_custom_call.1} parent=15 // pred_fallthru
          _
      $region16: #{tpu_custom_call.1} parent=5 // pred_fallthru
        _
      %p170 = scmp.le.s32.totalorder 1, %s11
      %p171 = scmp.lt.s32.totalorder %s11, 5
      %p172 = pnand %p170, %p171
      %p173 = pneg %p172
      // Predicated region
      $region25: #{tpu_custom_call.1} parent=5 // pred_check
        _
      $region26: #{tpu_custom_call.1} parent=5 // pred_check_branch
        %175 = sbr.rel (%p172) target = $region28
      $region27: #{tpu_custom_call.1} parent=5 // pred_region
        %s176 = ssub.s32 %s11, 1
        %s177 = smul.u32 %s20, 2
        %s178 = sadd.s32 %s177, %s21
        %p179 = scmp.lt.s32.totalorder %s178, 3
        %s180 = scalar_select %p179, %s178, 3
        %s181 = smul.u32 2, %s180
        %p182 = scmp.lt.s32.totalorder %s181, 7
        %s183 = scalar_select %p182, %s181, 7
        %s184 = smul.addr %s183, 8
        %s185 = scalar_lea.vmem %s0, %s184
        %p186 = pneg %p57
        %p187 = pneg %p54
        %s188 = smul.u32 %s20, 2
        %s189 = sadd.s32 %s188, %s21
        %p190 = scmp.lt.s32.totalorder %s189, 3
        %s191 = scalar_select %p190, %s189, 3
        %s192 = smul.u32 2, %s191
        %p193 = scmp.lt.s32.totalorder %s192, 7
        %s194 = scalar_select %p193, %s192, 7
        %s195 = smul.addr %s194, 8
        %s196 = scalar_lea.vmem %s1, %s195
        %p197 = pneg %p91
        %p198 = pneg %p88
        %p199 = pneg %p117
        %p200 = pneg %p114
        %s201 = sand.u32 %s104, 1
        %s202 = scalar_lea.sflag [#allocation3], %s201
        %s203 = sand.u32 %s104, 1
        %s204 = smul.addr %s203, 8
        %s205 = scalar_lea.vmem [#allocation2], %s204
        %s206 = smul.u32 %s20, 2
        %s207 = sadd.s32 %s206, %s21
        %p208 = scmp.lt.s32.totalorder %s207, 3
        %s209 = scalar_select %p208, %s207, 3
        %s210 = smul.u32 2, %s209
        %p211 = scmp.lt.s32.totalorder %s210, 7
        %s212 = scalar_select %p211, %s210, 7
        %s213 = smul.addr %s212, 8
        %s214 = scalar_lea.vmem %s0, %s213
        %s215 = smul.u32 %s20, 2
        %s216 = sadd.s32 %s215, %s21
        %p217 = scmp.lt.s32.totalorder %s216, 3
        %s218 = scalar_select %p217, %s216, 3
        %s219 = smul.u32 2, %s218
        %s220 = smul.u32 %s20, 2
        %s221 = sadd.s32 %s220, %s21
        %p222 = scmp.lt.s32.totalorder %s221, 3
        %s223 = scalar_select %p222, %s221, 3
        %s224 = smul.u32 2, %s223
        %p225 = scmp.lt.s32.totalorder %s224, 7
        %s226 = scalar_select %p225, %s224, 7
        %s227 = smul.addr %s226, 8
        %s228 = scalar_lea.vmem %s1, %s227
        %s229 = smul.u32 %s20, 2
        %s230 = sadd.s32 %s229, %s21
        %p231 = scmp.lt.s32.totalorder %s230, 3
        %s232 = scalar_select %p231, %s230, 3
        %s233 = smul.u32 2, %s232
        %p234 = scmp.eq.s32.totalorder %s21, 0
        // Predicated region
        $region29: #{tpu_custom_call.1} parent=27 // pred_check
          %p235 = pneg %p234
        $region30: #{tpu_custom_call.1} parent=27 // pred_check_branch
          %237 = sbr.rel (%p235) target = $region32
        $region31: #{tpu_custom_call.1} parent=27 // pred_region
          %238 = vst [vmem:[%s205] sm:$0xff] 0.0
        $region32: #{tpu_custom_call.1} parent=27 // pred_fallthru
          _
        %v239 = vld [vmem:[%s214] sm:$0xff]
        %v240 = vld [vmem:[%s214 + $0x8] sm:$0xff]
        %v241 = vld [vmem:[%s228] sm:$0xff]
        %v242 = vld [vmem:[%s228 + $0x8] sm:$0xff]
        %v243 = vlaneseq
        %v244 = vand.u32 %v243, 127
        %245 = vset.pattern.permute.xlu0 0
        %246 = vperm.xlu0 %245, %v241
        %v247 = vpop.permute.xlu0 %246
        %248 = vset.pattern.permute.xlu0 0
        %249 = vperm.xlu0 %248, %v242
        %v250 = vpop.permute.xlu0 %249
        %vm251 = vcmp.eq.s32.totalorder %v244, %v247
        %vm252 = vcmp.eq.s32.totalorder %v244, %v250
        %v253 = vsel %vm251, %v239, 0.0
        %v254 = vsel %vm252, %v240, 0.0
        %vm255 = vcmask 64512
        %v256 = vsel %vm255, %v253, 0.0
        %257 = vadd.xlane.f32.xlu0 %v256
        %v258 = vpop.xlane.xlu0 %257
        %v259 = vsel %vm255, %v254, 0.0
        %260 = vadd.xlane.f32.xlu0 %v259
        %v261 = vpop.xlane.xlu0 %260
        %v262 = vlaneseq
        %v263 = vshrl.u32 %v262, 7
        %v264 = vadd.s32 %v263, 8
        %s265 = smul.u32 %s20, 2
        %s266 = sadd.s32 %s265, %s21
        %s267 = smul.u32 %s266, 16
        %v268 = vstv %s267
        %v269 = vadd.s32 %v268, %v263
        %v270 = vadd.s32 %v268, %v264
        %vm271 = vcmp.lt.s32.totalorder %v269, 60
        %vm272 = vcmp.lt.s32.totalorder %v270, 60
        %v273 = vsel %vm271, %v258, 0.0
        %v274 = vsel %vm272, %v261, 0.0
        %vm275 = vcmask 7168
        %v276 = vsel %vm275, %v273, 0.0
        %v277 = vsel %vm275, %v274, 0.0
        %v278 = vadd.f32 %v276, %v277
        %279 = vadd.xlane.f32.xlu0 %v278
        %v280 = vpop.xlane.xlu0 %279
        %v281 = vrot.slane %v280, 4
        %v282 = vadd.f32 %v280, %v281
        %v283 = vrot.slane %v282, 2
        %v284 = vadd.f32 %v282, %v283
        %v285 = vrot.slane %v284, 1
        %v286 = vadd.f32 %v284, %v285
        %s287 = vtos %v286
        %v288 = vld [vmem:[%s205] sm:$0xff]
        %v289 = vstv %s287
        %v290 = vadd.f32 %v288, %v289
        %291 = vst [vmem:[%s205] sm:$0xff] %v290
        %s292 = sand.u32 %s104, 1
        %s293 = scalar_lea.sflag [#allocation3], %s292
        %s294 = sand.u32 %s104, 1
        %s295 = smul.addr %s294, 8
        %s296 = scalar_lea.vmem [#allocation2], %s295
        // Predicated region
        $region33: #{tpu_custom_call.1} parent=27 // pred_check
          %p297 = pneg %p114
        $region34: #{tpu_custom_call.1} parent=27 // pred_check_branch
          %299 = sbr.rel (%p297) target = $region36
        $region35: #{tpu_custom_call.1} parent=27 // pred_region
          %s301 = ssub.s32 128, 128
          %302 = vsyncadd %s293, %s301
          %s303 = smul.addr %s20, 128
          %s304 = scalar_lea.hbm %s2, %s303
          %s306 = sshll.u32 %s296, 4
          %s307 = int_to_ptr.vmem [resolvable:$true] %s306
          %309 = dma.vmem_to_hbm [thread:$0]  %s307, 128, %s304, %s293
        $region36: #{tpu_custom_call.1} parent=27 // pred_fallthru
          _
      $region28: #{tpu_custom_call.1} parent=5 // pred_fallthru
        _
      %p310 = scmp.le.s32.totalorder 2, %s11
      // Predicated region
      $region37: #{tpu_custom_call.1} parent=5 // pred_check
        %p311 = pneg %p310
      $region38: #{tpu_custom_call.1} parent=5 // pred_check_branch
        %313 = sbr.rel (%p311) target = $region40
      $region39: #{tpu_custom_call.1} parent=5 // pred_region
        %s314 = ssub.s32 %s11, 2
        // Predicated region
        $region41: #{tpu_custom_call.1} parent=39 // pred_check
          %p315 = pneg %p120
        $region42: #{tpu_custom_call.1} parent=39 // pred_check_branch
          %317 = sbr.rel (%p315) target = $region44
        $region43: #{tpu_custom_call.1} parent=39 // pred_region
          %s318 = sand.u32 %s105, 1
          %s319 = scalar_lea.sflag [#allocation3], %s318
          %s320 = sand.u32 %s105, 1
          %s321 = smul.addr %s320, 8
          %s322 = scalar_lea.vmem [#allocation2], %s321
          %323 = dma.done %s319, 128
        $region44: #{tpu_custom_call.1} parent=39 // pred_fallthru
          _
      $region40: #{tpu_custom_call.1} parent=5 // pred_fallthru
        _
    $region6: #{tpu_custom_call.1} parent=1 // loop_footer
      %s15 = sadd.s32 1, %s11
    $region7: #{tpu_custom_call.1} parent=1 // loop_footer_branch
      %10 = sbr.rel target = $region3
    $region8: #{tpu_custom_call.1} parent=1 // loop_exit
      _
    %324 = vsyncpa [#allocation3], 1
    %s325 = scalar_lea.sflag [#allocation3], 1
    %326 = vsyncpa %s325, 1

</llo_original>
